<compile_context>
chip_gen: v6e
topology: v6e:2x2x1
jax: 0.10.0
libtpu: 0.0.40
codegen_flags: <defaults>
</compile_context>

<pallas_src>
import functools

import jax
import jax.numpy as jnp
from jax.experimental import pallas as pl
from jax.experimental.pallas import tpu as pltpu

FACTORS = [1, 1, 1, 1, 1 / 2, 1 / 4, 1 / 8, 1 / 16, 1 / 32]
EPS = 1e-8

_VMEM = pl.BlockSpec(memory_space=pltpu.MemorySpace.VMEM)
_VMEM_LIMIT = 48 * 1024 * 1024          # headroom under v7x's 64 MiB physical VMEM
_CONV_TILE_BUDGET = 8 * 1024 * 1024     # per-step working-set target for the conv


# ---------------------------------------------------------------------------
# Tile-size helpers
# ---------------------------------------------------------------------------
def _conv_row_tile(H, W, cin, cout):
    """Largest row tile (divisor of H, <= 8 for the demo) within the VMEM budget."""
    for th in sorted([d for d in range(1, H + 1) if H % d == 0 and d <= 8],
                     reverse=True):
        footprint = 4 * ((th + 2) * (W + 2) * cin        # padded input window
                         + th * W * (9 * cin + cout)     # im2col patch + out tile
                         + 9 * cin * cout)               # weights
        if footprint <= _CONV_TILE_BUDGET:
            return th
    return 1


def _rgb_row_tile(H, W):
    """Row tile for the lane-dense RGB output: TH*W must be a multiple of 128
    (or TH == H so the block equals the full array)."""
    for th in sorted([d for d in range(1, H + 1) if H % d == 0 and d <= 8],
                     reverse=True):
        if (th * W) % 128 == 0:
            return th
    return H


# ---------------------------------------------------------------------------
# Kernels
# ---------------------------------------------------------------------------
def _init_kernel(x_ref, w_ref, b_ref, o_ref):
    # PixelNorm(z) -> ConvTranspose2d(z, C, 4, 1, 0) on a 1x1 latent (== matmul)
    # -> LeakyReLU(0.2).  Weight pre-reordered so the output is NHWC-flat.
    x = x_ref[...]
    xn = x * jax.lax.rsqrt(jnp.mean(x * x, axis=1, keepdims=True) + EPS)
    y = jnp.dot(xn, w_ref[...], preferred_element_type=jnp.float32) + b_ref[...]
    o_ref[...] = jnp.where(y > 0.0, y, 0.2 * y)


def _eqconv3x3_kernel(TH, W, pixel_norm, x_hbm, w_ref, b_ref, o_ref, xpad, sem):
    # Row-tiled 3x3 conv (+bias, LeakyReLU, optional PixelNorm), halo + zero
    # padding handled in-kernel.  x_hbm: (N, H, W, Cin) in HBM (pl.ANY).
    # w_ref: (9*Cin, Cout) with the equalized-LR scale folded in.
    n = pl.program_id(0)
    i = pl.program_id(1)
    nrt = pl.num_programs(1)
    Cin = x_hbm.shape[-1]
    Cout = w_ref.shape[-1]
    r0 = pl.multiple_of(i * TH, TH)

    # Interior rows of the window: always valid, fetched asynchronously.
    cp_mid = pltpu.make_async_copy(
        x_hbm.at[n, pl.ds(r0, TH), :, :],
        xpad.at[pl.ds(1, TH), pl.ds(1, W), :],
        sem.at[0],
    )
    cp_mid.start()

    # Top halo row: real data for interior tiles, zeros at the image border.
    @pl.when(i > 0)
    def _():
        cp = pltpu.make_async_copy(
            x_hbm.at[n, pl.ds(r0 - 1, 1), :, :],
            xpad.at[pl.ds(0, 1), pl.ds(1, W), :],
            sem.at[1])
        cp.start()
        cp.wait()

    @pl.when(i == 0)
    def _():
        xpad[0:1, :, :] = jnp.zeros((1, W + 2, Cin), jnp.float32)

    # Bottom halo row.
    @pl.when(i < nrt - 1)
    def _():
        cp = pltpu.make_async_copy(
            x_hbm.at[n, pl.ds(r0 + TH, 1), :, :],
            xpad.at[pl.ds(TH + 1, 1), pl.ds(1, W), :],
            sem.at[2])
        cp.start()
        cp.wait()

    @pl.when(i == nrt - 1)
    def _():
        xpad[TH + 1:TH + 2, :, :] = jnp.zeros((1, W + 2, Cin), jnp.float32)

    # Left / right zero-padding columns (never written by the DMAs).
    xpad[:, 0:1, :] = jnp.zeros((TH + 2, 1, Cin), jnp.float32)
    xpad[:, W + 1:W + 2, :] = jnp.zeros((TH + 2, 1, Cin), jnp.float32)

    cp_mid.wait()

    # im2col: one matmul with K = 9*Cin instead of 9 skinny K=Cin matmuls.
    xp = xpad[...]                                        # (TH+2, W+2, Cin)
    cols = [xp[kh:kh + TH, kw:kw + W, :] for kh in range(3) for kw in range(3)]
    patch = jnp.concatenate(cols, axis=-1).reshape(TH * W, 9 * Cin)
    y = jnp.dot(patch, w_ref[...], preferred_element_type=jnp.float32) + b_ref[...]
    y = jnp.where(y > 0.0, y, 0.2 * y)                    # LeakyReLU(0.2)
    if pixel_norm:                                        # PixelNorm over channels
        y = y * jax.lax.rsqrt(jnp.mean(y * y, axis=-1, keepdims=True) + EPS)
    o_ref[...] = y.reshape(1, TH, W, Cout)


def _rgb_fade_kernel(alpha, up_ref, gen_ref, wu_ref, bu_ref, wg_ref, bg_ref, o_ref):
    # Fused: to-RGB(up) , to-RGB(gen) , tanh(alpha*gen + (1-alpha)*up).
    # Output is lane-dense: (1, img_ch, TH*W) with pixels on the lane axis.
    _, TH, W, Cup = up_ref.shape
    Cg = gen_ref.shape[-1]
    P = TH * W
    xu = up_ref[...].reshape(P, Cup)
    xg = gen_ref[...].reshape(P, Cg)
    dn = (((1,), (1,)), ((), ()))                         # contract channel dims
    ru = jax.lax.dot_general(wu_ref[...], xu, dn,
                             preferred_element_type=jnp.float32) + bu_ref[...]
    rg = jax.lax.dot_general(wg_ref[...], xg, dn,
                             preferred_element_type=jnp.float32) + bg_ref[...]
    o_ref[...] = jnp.tanh(alpha * rg + (1.0 - alpha) * ru)[None]


def _rgb_kernel(x_ref, w_ref, b_ref, o_ref):
    # to-RGB only (steps == 0 path), lane-dense output (1, img_ch, TH*W).
    _, TH, W, C = x_ref.shape
    P = TH * W
    x = x_ref[...].reshape(P, C)
    dn = (((1,), (1,)), ((), ()))
    r = jax.lax.dot_general(w_ref[...], x, dn,
                            preferred_element_type=jnp.float32) + b_ref[...]
    o_ref[...] = r[None]


# ---------------------------------------------------------------------------
# Pallas wrappers
# ---------------------------------------------------------------------------
def convt_init(x_flat, w, b):
    # x_flat: (N, Z)  w: (Z, C, 4, 4)  b: (C,)  -> (N, 4, 4, C) NHWC
    N, Z = x_flat.shape
    C = w.shape[1]
    w2 = jnp.transpose(w, (0, 2, 3, 1)).reshape(Z, 16 * C)   # (Z, h*w*C), NHWC order
    b2 = jnp.tile(b, 16).reshape(1, 16 * C)
    out = pl.pallas_call(
        _init_kernel,
        out_shape=jax.ShapeDtypeStruct((N, 16 * C), jnp.float32),
        in_specs=[_VMEM, _VMEM, _VMEM],
        out_specs=_VMEM,
    )(x_flat, w2, b2)
    return out.reshape(N, 4, 4, C)


def eqconv3x3(x_nhwc, w_oihw, b, pixel_norm=True):
    N, H, W, Cin = x_nhwc.shape
    Cout = w_oihw.shape[0]
    scale = (2.0 / (Cin * 9)) ** 0.5
    # Fold the equalized-LR scale into the weight; layout (kh*3+kw)*Cin+cin , cout.
    w2 = (jnp.transpose(w_oihw, (2, 3, 1, 0)) * scale).reshape(9 * Cin, Cout)
    b2 = b.reshape(1, Cout)
    TH = _conv_row_tile(H, W, Cin, Cout)
    kern = functools.partial(_eqconv3x3_kernel, TH, W, pixel_norm)
    return pl.pallas_call(
        kern,
        out_shape=jax.ShapeDtypeStruct((N, H, W, Cout), jnp.float32),
        grid=(N, H // TH),
        in_specs=[
            pl.BlockSpec(memory_space=pl.ANY),                    # x stays in HBM
            pl.BlockSpec((9 * Cin, Cout), lambda n, i: (0, 0)),
            pl.BlockSpec((1, Cout), lambda n, i: (0, 0)),
        ],
        out_specs=pl.BlockSpec((1, TH, W, Cout), lambda n, i: (n, i, 0, 0)),
        scratch_shapes=[
            pltpu.VMEM((TH + 2, W + 2, Cin), jnp.float32),        # padded window
            pltpu.SemaphoreType.DMA((3,)),
        ],
        compiler_params=pltpu.CompilerParams(
            dimension_semantics=("parallel", "parallel"),
            vmem_limit_bytes=_VMEM_LIMIT),
    )(x_nhwc, w2, b2)


def rgb_fade(alpha, up_nhwc, gen_nhwc, w_up, b_up, w_gen, b_gen):
    # Fused to-RGB(up)/to-RGB(gen)/fade-in/tanh.  Returns NCHW directly.
    N, H, W, Cup = up_nhwc.shape
    Cg = gen_nhwc.shape[-1]
    img = w_up.shape[0]
    wu = w_up.reshape(img, Cup) * ((2.0 / Cup) ** 0.5)
    wg = w_gen.reshape(img, Cg) * ((2.0 / Cg) ** 0.5)
    bu = b_up.reshape(img, 1)
    bg = b_gen.reshape(img, 1)
    TH = _rgb_row_tile(H, W)
    kern = functools.partial(_rgb_fade_kernel, float(alpha))  # alpha is a static const
    out = pl.pallas_call(
        kern,
        out_shape=jax.ShapeDtypeStruct((N, img, H * W), jnp.float32),
        grid=(N, H // TH),
        in_specs=[
            pl.BlockSpec((1, TH, W, Cup), lambda n, i: (n, i, 0, 0)),
            pl.BlockSpec((1, TH, W, Cg), lambda n, i: (n, i, 0, 0)),
            pl.BlockSpec((img, Cup), lambda n, i: (0, 0)),
            pl.BlockSpec((img, 1), lambda n, i: (0, 0)),
            pl.BlockSpec((img, Cg), lambda n, i: (0, 0)),
            pl.BlockSpec((img, 1), lambda n, i: (0, 0)),
        ],
        out_specs=pl.BlockSpec((1, img, TH * W), lambda n, i: (n, 0, i)),
        compiler_params=pltpu.CompilerParams(
            dimension_semantics=("parallel", "parallel"),
            vmem_limit_bytes=_VMEM_LIMIT),
    )(up_nhwc, gen_nhwc, wu, bu, wg, bg)
    return out.reshape(N, img, H, W)


def rgb_only(x_nhwc, w_oihw, b):
    N, H, W, C = x_nhwc.shape
    img = w_oihw.shape[0]
    w2 = w_oihw.reshape(img, C) * ((2.0 / C) ** 0.5)
    b2 = b.reshape(img, 1)
    TH = _rgb_row_tile(H, W)
    out = pl.pallas_call(
        _rgb_kernel,
        out_shape=jax.ShapeDtypeStruct((N, img, H * W), jnp.float32),
        grid=(N, H // TH),
        in_specs=[
            pl.BlockSpec((1, TH, W, C), lambda n, i: (n, i, 0, 0)),
            pl.BlockSpec((img, C), lambda n, i: (0, 0)),
            pl.BlockSpec((img, 1), lambda n, i: (0, 0)),
        ],
        out_specs=pl.BlockSpec((1, img, TH * W), lambda n, i: (n, 0, i)),
        compiler_params=pltpu.CompilerParams(
            dimension_semantics=("parallel", "parallel"),
            vmem_limit_bytes=_VMEM_LIMIT),
    )(x_nhwc, w2, b2)
    return out.reshape(N, img, H, W)


def upsample_nearest_2x(x_nhwc):
    # TODO(synk): fuse this into the following conv kernel's input gather.
    x = jnp.repeat(x_nhwc, 2, axis=1)
    return jnp.repeat(x, 2, axis=2)


# ---------------------------------------------------------------------------
# Generator forward (mirrors the PyTorch module)
# ---------------------------------------------------------------------------
def generator_forward(params, x_nchw, alpha, steps):
    """x_nchw: (N, z_dim, 1, 1); returns NCHW like PyTorch."""
    N = x_nchw.shape[0]
    x_flat = x_nchw.reshape(N, -1)

    # self.initial: PixelNorm -> ConvT(4x4) -> LeakyReLU -> EqConv3x3 -> LeakyReLU -> PixelNorm
    out = convt_init(x_flat, params['convt_w'], params['convt_b'])
    out = eqconv3x3(out, params['init_conv_w'], params['init_conv_b'], pixel_norm=True)

    if steps == 0:
        return rgb_only(out, params['rgb_w'][0], params['rgb_b'][0])

    up = out
    for step in range(steps):
        up = upsample_nearest_2x(out)
        blk = params['blocks'][step]
        h = eqconv3x3(up, blk['w1'], blk['b1'], pixel_norm=True)
        out = eqconv3x3(h, blk['w2'], blk['b2'], pixel_norm=True)

    return rgb_fade(alpha, up, out,
                    params['rgb_w'][steps - 1], params['rgb_b'][steps - 1],
                    params['rgb_w'][steps], params['rgb_b'][steps])


# ---------------------------------------------------------------------------
# Deterministic parameter init (PyTorch weight layouts: OIHW, convT = IOHW)
# ---------------------------------------------------------------------------
def init_params(key, z_dim, in_channels, img_channels):
    keys = iter(jax.random.split(key, 64))
    p = {}
    p['convt_w'] = 0.1 * jax.random.normal(next(keys), (z_dim, in_channels, 4, 4), jnp.float32)
    p['convt_b'] = 0.1 * jax.random.normal(next(keys), (in_channels,), jnp.float32)
    p['init_conv_w'] = jax.random.normal(next(keys), (in_channels, in_channels, 3, 3), jnp.float32)
    p['init_conv_b'] = 0.1 * jax.random.normal(next(keys), (in_channels,), jnp.float32)
    rgb_w = [jax.random.normal(next(keys), (img_channels, in_channels, 1, 1), jnp.float32)]
    rgb_b = [0.1 * jax.random.normal(next(keys), (img_channels,), jnp.float32)]
    blocks = []
    for i in range(len(FACTORS) - 1):
        cin = int(in_channels * FACTORS[i])
        cout = int(in_channels * FACTORS[i + 1])
        blocks.append({
            'w1': jax.random.normal(next(keys), (cout, cin, 3, 3), jnp.float32),
            'b1': 0.1 * jax.random.normal(next(keys), (cout,), jnp.float32),
            'w2': jax.random.normal(next(keys), (cout, cout, 3, 3), jnp.float32),
            'b2': 0.1 * jax.random.normal(next(keys), (cout,), jnp.float32),
        })
        rgb_w.append(jax.random.normal(next(keys), (img_channels, cout, 1, 1), jnp.float32))
        rgb_b.append(0.1 * jax.random.normal(next(keys), (img_channels,), jnp.float32))
    p['blocks'] = blocks
    p['rgb_w'] = rgb_w
    p['rgb_b'] = rgb_b
    return p


# ---------------------------------------------------------------------------
# Pure-JAX reference (NCHW, mirrors PyTorch exactly) for a correctness check
# ---------------------------------------------------------------------------
def ref_forward(params, x, alpha, steps):
    leaky = lambda v: jnp.where(v > 0, v, 0.2 * v)
    pixelnorm = lambda v: v / jnp.sqrt(jnp.mean(v * v, axis=1, keepdims=True) + EPS)

    def eqconv(v, w, b, pad):
        cin, k = w.shape[1], w.shape[2]
        scale = (2.0 / (cin * k * k)) ** 0.5
        y = jax.lax.conv_general_dilated(
            v * scale, w, (1, 1), [(pad, pad), (pad, pad)],
            dimension_numbers=('NCHW', 'OIHW', 'NCHW'),
            precision=jax.lax.Precision.HIGHEST)
        return y + b[None, :, None, None]

    h = pixelnorm(x)
    h = jnp.einsum('nz,zcij->ncij', h[:, :, 0, 0], params['convt_w'],
                   precision=jax.lax.Precision.HIGHEST) + params['convt_b'][None, :, None, None]
    h = leaky(h)
    out = pixelnorm(leaky(eqconv(h, params['init_conv_w'], params['init_conv_b'], 1)))
    if steps == 0:
        return eqconv(out, params['rgb_w'][0], params['rgb_b'][0], 0)
    up = out
    for step in range(steps):
        up = jnp.repeat(jnp.repeat(out, 2, axis=2), 2, axis=3)
        blk = params['blocks'][step]
        out = pixelnorm(leaky(eqconv(up, blk['w1'], blk['b1'], 1)))
        out = pixelnorm(leaky(eqconv(out, blk['w2'], blk['b2'], 1)))
    f_up = eqconv(up, params['rgb_w'][steps - 1], params['rgb_b'][steps - 1], 0)
    f_out = eqconv(out, params['rgb_w'][steps], params['rgb_b'][steps], 0)
    return jnp.tanh(alpha * f_out + (1.0 - alpha) * f_up)


# ---------------------------------------------------------------------------
if __name__ == "__main__":
    z_dim, in_channels, img_channels = 32, 32, 3
    N, steps, alpha = 2, 2, 0.6

    key = jax.random.PRNGKey(0)
    pkey, xkey = jax.random.split(key)
    params = init_params(pkey, z_dim, in_channels, img_channels)
    x = jax.random.normal(xkey, (N, z_dim, 1, 1), jnp.float32)

    out = generator_forward(params, x, alpha, steps)
    out = jax.block_until_ready(out)

    expected_hw = 4 * (2 ** steps)
    assert out.shape == (N, img_channels, expected_hw, expected_hw), out.shape

    ref = ref_forward(params, x, alpha, steps)
    max_err = float(jnp.max(jnp.abs(out - ref)))
    assert max_err < 2e-2, f"mismatch vs reference: max_err={max_err}"

    print("KERNEL_OK")
</pallas_src>

<mosaic_0001>
module attributes {stable_mosaic.version = 11 : i64} {
  func.func @_init_kernel(%arg0: memref<2x32xf32, #tpu.memory_space<vmem>>, %arg1: memref<32x512xf32, #tpu.memory_space<vmem>>, %arg2: memref<1x512xf32, #tpu.memory_space<vmem>>, %arg3: memref<2x512xf32, #tpu.memory_space<vmem>>) attributes {dimension_semantics = [], scalar_prefetch = 0 : i64, scratch_operands = 0 : i64, tpu.core_type = #tpu.core_type<tc>} {
    %c0 = arith.constant 0 : index
    %c0_0 = arith.constant 0 : index
    %0 = vector.load %arg0[%c0, %c0_0] : memref<2x32xf32, #tpu.memory_space<vmem>>, vector<2x32xf32>
    %1 = arith.mulf %0, %0 : vector<2x32xf32>
    %cst = arith.constant dense<0.000000e+00> : vector<2xf32>
    %2 = vector.multi_reduction <add>, %1, %cst [1] : vector<2x32xf32> to vector<2xf32>
    %3 = vector.shape_cast %2 : vector<2xf32> to vector<2x1xf32>
    %cst_1 = arith.constant 3.200000e+01 : f32
    %4 = vector.broadcast %cst_1 : f32 to vector<2x1xf32>
    %5 = arith.divf %3, %4 : vector<2x1xf32>
    %cst_2 = arith.constant 9.99999993E-9 : f32
    %6 = vector.broadcast %cst_2 : f32 to vector<2x1xf32>
    %7 = arith.addf %5, %6 : vector<2x1xf32>
    %8 = math.rsqrt %7 : vector<2x1xf32>
    %9 = vector.broadcast %8 : vector<2x1xf32> to vector<2x32xf32>
    %10 = arith.mulf %0, %9 : vector<2x32xf32>
    %c0_3 = arith.constant 0 : index
    %c0_4 = arith.constant 0 : index
    %11 = vector.load %arg1[%c0_3, %c0_4] : memref<32x512xf32, #tpu.memory_space<vmem>>, vector<32x512xf32>
    %cst_5 = arith.constant dense<0.000000e+00> : vector<2x512xf32>
    %12 = tpu.matmul %10, %11, %cst_5 {dimension_numbers = #tpu.dot_dimension_numbers<[1], [0], [0], [1], [0, 0, 1, 1], [], []>} : vector<2x32xf32>, vector<32x512xf32>, vector<2x512xf32> -> vector<2x512xf32>
    %c0_6 = arith.constant 0 : index
    %c0_7 = arith.constant 0 : index
    %13 = vector.load %arg2[%c0_6, %c0_7] : memref<1x512xf32, #tpu.memory_space<vmem>>, vector<1x512xf32>
    %14 = vector.broadcast %13 : vector<1x512xf32> to vector<2x512xf32>
    %15 = arith.addf %12, %14 : vector<2x512xf32>
    %cst_8 = arith.constant 0.000000e+00 : f32
    %16 = vector.broadcast %cst_8 : f32 to vector<2x512xf32>
    %17 = arith.cmpf ogt, %15, %16 : vector<2x512xf32>
    %cst_9 = arith.constant 2.000000e-01 : f32
    %18 = vector.broadcast %cst_9 : f32 to vector<2x512xf32>
    %19 = arith.mulf %18, %15 : vector<2x512xf32>
    %20 = arith.select %17, %15, %19 : vector<2x512xi1>, vector<2x512xf32>
    %c0_10 = arith.constant 0 : index
    %c0_11 = arith.constant 0 : index
    %21 = vector.load %arg3[%c0_10, %c0_11] : memref<2x512xf32, #tpu.memory_space<vmem>>, vector<2x512xf32>
    tpu.vector_store %arg3[%c0_10, %c0_11], %20 {strides = array<i32>} : memref<2x512xf32, #tpu.memory_space<vmem>>, vector<2x512xf32>,
    return
  }
}

</mosaic_0001>

<llo_original>
// kernel: tpu_custom_call.1
$region0: #{tpu_custom_call.1}
  #allocation0 [shape = 'u32[]', space=smem, size = 0x4, offset = 0x4, fixed_abs, tag = 'smem constant byte address 0x4 - core index']
  #allocation1 [shape = 'u32[144,128]{1,0:T(1,128)}', space=vmem, size = 0x12000, scoped, tag = 'internal scratch']
  %s0 = inlined_call_operand.hbm [shape: f32[2,32], index: 0, kind: input, shape index: {}]
  %s1 = inlined_call_operand.hbm [shape: f32[32,512], index: 1, kind: input, shape index: {}]
  %s2 = inlined_call_operand.hbm [shape: f32[1,512], index: 2, kind: input, shape index: {}]
  %s3 = inlined_call_operand.hbm [shape: f32[2,512], index: 3, kind: output, shape index: {}]
  %s4 = sld [smem:[#allocation0]]
  $region34: #{tpu_custom_call.1} parent=0
    _
  %s6 = ssub.s32 1, %s4
  %s7 = scalar_select 0, %s6, %s4
  $region1: #{tpu_custom_call.1} parent=0
    #allocation2 [shape = 'u8[1024]{0}', space=vmem, size = 0x400, scoped, tag = 'input window, operand 0, single buffered']
    #allocation3 [shape = 's32[1]{0}', space=sflag, size = 0x4, scoped, tag = 'scoped memory for tpu_custom_call.1']
    #allocation4 [shape = 's32[1]{0}', space=sflag, size = 0x4, scoped, tag = 'scoped memory for tpu_custom_call.1']
    #allocation5 [shape = 'u8[65536]{0}', space=vmem, size = 0x10000, scoped, tag = 'input window, operand 1, single buffered']
    #allocation6 [shape = 's32[1]{0}', space=sflag, size = 0x4, scoped, tag = 'scoped memory for tpu_custom_call.1']
    #allocation7 [shape = 'u8[2048]{0}', space=vmem, size = 0x800, scoped, tag = 'input window, operand 2, single buffered']
    #allocation8 [shape = 'u8[4096]{0}', space=vmem, size = 0x1000, scoped, tag = 'output window, operand 0, single buffered']
    %8 = vsyncpa [#allocation3], 0
    %9 = vsyncpa [#allocation6], 0
    %10 = vsyncpa [#allocation4], 0
    // Predicated region
    $region2: #{tpu_custom_call.1} parent=1 // pred_check
      _
    $region3: #{tpu_custom_call.1} parent=1 // pred_check_branch
      %12 = sbr.rel (0) target = $region5
    $region4: #{tpu_custom_call.1} parent=1 // pred_region
      %s14 = ssub.s32 32, 32
      %15 = vsyncadd [#allocation3], %s14
      %s17 = sshll.u32 [#allocation2], 4
      %s18 = int_to_ptr.vmem [resolvable:$true] %s17
      %20 = dma.hbm_to_vmem [thread:$0]  %s0, 32, %s18, [#allocation3]
    $region5: #{tpu_custom_call.1} parent=1 // pred_fallthru
      _
    // Predicated region
    $region6: #{tpu_custom_call.1} parent=1 // pred_check
      _
    $region7: #{tpu_custom_call.1} parent=1 // pred_check_branch
      %22 = sbr.rel (0) target = $region9
    $region8: #{tpu_custom_call.1} parent=1 // pred_region
      %s24 = ssub.s32 2048, 2048
      %25 = vsyncadd [#allocation6], %s24
      %s26 = sshll.u32 [#allocation5], 4
      %s27 = int_to_ptr.vmem [resolvable:$true] %s26
      %32 = dma.hbm_to_vmem [thread:$0]  %s1, 2048, %s27, [#allocation6], 512, 512, 32
    $region9: #{tpu_custom_call.1} parent=1 // pred_fallthru
      _
    // Predicated region
    $region10: #{tpu_custom_call.1} parent=1 // pred_check
      _
    $region11: #{tpu_custom_call.1} parent=1 // pred_check_branch
      %34 = sbr.rel (0) target = $region13
    $region12: #{tpu_custom_call.1} parent=1 // pred_region
      %s36 = ssub.s32 64, 64
      %37 = vsyncadd [#allocation6], %s36
      %s39 = sshll.u32 [#allocation7], 4
      %s40 = int_to_ptr.vmem [resolvable:$true] %s39
      %42 = dma.hbm_to_vmem [thread:$0]  %s2, 64, %s40, [#allocation6]
    $region13: #{tpu_custom_call.1} parent=1 // pred_fallthru
      _
    // Predicated region
    $region14: #{tpu_custom_call.1} parent=1 // pred_check
      _
    $region15: #{tpu_custom_call.1} parent=1 // pred_check_branch
      %44 = sbr.rel (0) target = $region17
    $region16: #{tpu_custom_call.1} parent=1 // pred_region
      %45 = dma.done [#allocation3], 32
    $region17: #{tpu_custom_call.1} parent=1 // pred_fallthru
      _
    // Predicated region
    $region18: #{tpu_custom_call.1} parent=1 // pred_check
      _
    $region19: #{tpu_custom_call.1} parent=1 // pred_check_branch
      %47 = sbr.rel (0) target = $region21
    $region20: #{tpu_custom_call.1} parent=1 // pred_region
      %48 = dma.done [#allocation6], 2048
    $region21: #{tpu_custom_call.1} parent=1 // pred_fallthru
      _
    // Predicated region
    $region22: #{tpu_custom_call.1} parent=1 // pred_check
      _
    $region23: #{tpu_custom_call.1} parent=1 // pred_check_branch
      %50 = sbr.rel (0) target = $region25
    $region24: #{tpu_custom_call.1} parent=1 // pred_region
      %51 = dma.done [#allocation6], 64
    $region25: #{tpu_custom_call.1} parent=1 // pred_fallthru
      _
    %v52 = vld [vmem:[#allocation2] sm:$0x3]
    %v53 = vmul.f32 %v52, %v52
    %vm54 = vcmask 254976
    %v55 = vsel %vm54, %v53, 0.0
    %56 = vadd.xlane.f32.xlu0 %v55
    %v57 = vpop.xlane.xlu0 %56
    %v58 = vrcp.pop 32.0
    %v59 = vmul.f32 %v57, %v58
    %v60 = vadd.f32 %v59, 1e-08
    %v61 = vrsqrt.pop %v60
    %v62 = vmul.f32 %v52, %v61
    %v63 = vld [vmem:[#allocation5] sm:$0xff]
    %v64 = vld [vmem:[#allocation5 + $0x8] sm:$0xff]
    %v65 = vld [vmem:[#allocation5 + $0x10] sm:$0xff]
    %v66 = vld [vmem:[#allocation5 + $0x18] sm:$0xff]
    %v67 = vld [vmem:[#allocation5 + $0x20] sm:$0xff]
    %v68 = vld [vmem:[#allocation5 + $0x28] sm:$0xff]
    %v69 = vld [vmem:[#allocation5 + $0x30] sm:$0xff]
    %v70 = vld [vmem:[#allocation5 + $0x38] sm:$0xff]
    %v71 = vld [vmem:[#allocation5 + $0x40] sm:$0xff]
    %v72 = vld [vmem:[#allocation5 + $0x48] sm:$0xff]
    %v73 = vld [vmem:[#allocation5 + $0x50] sm:$0xff]
    %v74 = vld [vmem:[#allocation5 + $0x58] sm:$0xff]
    %v75 = vld [vmem:[#allocation5 + $0x60] sm:$0xff]
    %v76 = vld [vmem:[#allocation5 + $0x68] sm:$0xff]
    %v77 = vld [vmem:[#allocation5 + $0x70] sm:$0xff]
    %v78 = vld [vmem:[#allocation5 + $0x78] sm:$0xff]
    %v79 = vld [vmem:[#allocation7] sm:$0xf]
    %v81 = vlaneseq
    %v82 = vshrl.u32 %v81, 7
    %v83 = vsub.s32 0, %v82
    %v84 = vrot.slane %v79, %v83
    %v85 = vlaneseq
    %v86 = vshrl.u32 %v85, 7
    %v87 = vsub.s32 1, %v86
    %v88 = vrot.slane %v79, %v87
    %v89 = vlaneseq
    %v90 = vshrl.u32 %v89, 7
    %v91 = vsub.s32 2, %v90
    %v92 = vrot.slane %v79, %v91
    %v93 = vlaneseq
    %v94 = vshrl.u32 %v93, 7
    %v95 = vsub.s32 3, %v94
    %v96 = vrot.slane %v79, %v95
    %vm101 = vcmask 261120
    %v103 = vsel %vm101, %v62, 0
    %105 = vmatprep.subr.mxu0 0.0
    %106 = vmatpush1.msra.mxu0 0.0
    %107 = vmatprep.subr.mxu0 0.0
    %108 = vmatpush1.msra.mxu0 0.0
    %109 = vmatprep.subr.mxu0 0.0
    %110 = vmatpush1.msra.mxu0 0.0
    %111 = vmatprep.subr.mxu0 0.0
    %112 = vmatpush1.msra.mxu0 0.0
    %113 = vmatprep.subr.mxu0 0.0
    %114 = vmatpush1.msra.mxu0 0.0
    %115 = vmatprep.subr.mxu0 0.0
    %116 = vmatpush1.msra.mxu0 0.0
    %117 = vmatprep.subr.mxu0 0.0
    %118 = vmatpush1.msra.mxu0 0.0
    %119 = vmatprep.subr.mxu0 0.0
    %120 = vmatpush1.msra.mxu0 0.0
    %121 = vmatprep.subr.mxu0 0.0
    %122 = vmatpush1.msra.mxu0 0.0
    %123 = vmatprep.subr.mxu0 0.0
    %124 = vmatpush1.msra.mxu0 0.0
    %125 = vmatprep.subr.mxu0 0.0
    %126 = vmatpush1.msra.mxu0 0.0
    %127 = vmatprep.subr.mxu0 0.0
    %128 = vmatpush1.msra.mxu0 0.0
    %129 = vmatprep.subr.mxu0 %v76
    %130 = vmatpush1.msra.mxu0 %v75
    %131 = vmatprep.subr.mxu0 %v72
    %132 = vmatpush1.msra.mxu0 %v71
    %133 = vmatprep.subr.mxu0 %v68
    %134 = vmatpush1.msra.mxu0 %v67
    %135 = vmatprep.subr.mxu0 %v64
    %136 = vmatpush1.msra.mxu0 %v63
    %137 = vmatprep.subr.mxu0 0.0
    %138 = vmatpush2.msra.mxu0 0.0
    %139 = vmatprep.subr.mxu0 0.0
    %140 = vmatpush2.msra.mxu0 0.0
    %141 = vmatprep.subr.mxu0 0.0
    %142 = vmatpush2.msra.mxu0 0.0
    %143 = vmatprep.subr.mxu0 0.0
    %144 = vmatpush2.msra.mxu0 0.0
    %145 = vmatprep.subr.mxu0 0.0
    %146 = vmatpush2.msra.mxu0 0.0
    %147 = vmatprep.subr.mxu0 0.0
    %148 = vmatpush2.msra.mxu0 0.0
    %149 = vmatprep.subr.mxu0 0.0
    %150 = vmatpush2.msra.mxu0 0.0
    %151 = vmatprep.subr.mxu0 0.0
    %152 = vmatpush2.msra.mxu0 0.0
    %153 = vmatprep.subr.mxu0 0.0
    %154 = vmatpush2.msra.mxu0 0.0
    %155 = vmatprep.subr.mxu0 0.0
    %156 = vmatpush2.msra.mxu0 0.0
    %157 = vmatprep.subr.mxu0 0.0
    %158 = vmatpush2.msra.mxu0 0.0
    %159 = vmatprep.subr.mxu0 0.0
    %160 = vmatpush2.msra.mxu0 0.0
    %161 = vmatprep.subr.mxu0 0.0
    %162 = vmatpush2.msra.mxu0 0.0
    %163 = vmatprep.subr.mxu0 0.0
    %164 = vmatpush2.msra.mxu0 0.0
    %165 = vmatprep.subr.mxu0 0.0
    %166 = vmatpush2.msra.mxu0 0.0
    %167 = vmatprep.subr.mxu0 0.0
    %168 = vmatpush2.msra.mxu0 0.0
    %169 = vmatprep.mubr.f32.mxu0 0.0
    %170 = vmatmul.mubr.f32.gmra.mxu0 %v103
    %v171 = vpop.f32.mrf.mxu0
    %v172 = vadd.f32 %v84, %v171
    %v173 = vpop.f32.mrf.mxu0
    %v174 = vadd.f32 %v88, %v173
    %175 = vdwg.mxu0
    %176 = vmatprep.subr.mxu0 0.0
    %177 = vmatpush1.msra.mxu0 0.0
    %178 = vmatprep.subr.mxu0 0.0
    %179 = vmatpush1.msra.mxu0 0.0
    %180 = vmatprep.subr.mxu0 0.0
    %181 = vmatpush1.msra.mxu0 0.0
    %182 = vmatprep.subr.mxu0 0.0
    %183 = vmatpush1.msra.mxu0 0.0
    %184 = vmatprep.subr.mxu0 0.0
    %185 = vmatpush1.msra.mxu0 0.0
    %186 = vmatprep.subr.mxu0 0.0
    %187 = vmatpush1.msra.mxu0 0.0
    %188 = vmatprep.subr.mxu0 0.0
    %189 = vmatpush1.msra.mxu0 0.0
    %190 = vmatprep.subr.mxu0 0.0
    %191 = vmatpush1.msra.mxu0 0.0
    %192 = vmatprep.subr.mxu0 0.0
    %193 = vmatpush1.msra.mxu0 0.0
    %194 = vmatprep.subr.mxu0 0.0
    %195 = vmatpush1.msra.mxu0 0.0
    %196 = vmatprep.subr.mxu0 0.0
    %197 = vmatpush1.msra.mxu0 0.0
    %198 = vmatprep.subr.mxu0 0.0
    %199 = vmatpush1.msra.mxu0 0.0
    %200 = vmatprep.subr.mxu0 %v78
    %201 = vmatpush1.msra.mxu0 %v77
    %202 = vmatprep.subr.mxu0 %v74
    %203 = vmatpush1.msra.mxu0 %v73
    %204 = vmatprep.subr.mxu0 %v70
    %205 = vmatpush1.msra.mxu0 %v69
    %206 = vmatprep.subr.mxu0 %v66
    %207 = vmatpush1.msra.mxu0 %v65
    %208 = vmatprep.subr.mxu0 0.0
    %209 = vmatpush2.msra.mxu0 0.0
    %210 = vmatprep.subr.mxu0 0.0
    %211 = vmatpush2.msra.mxu0 0.0
    %212 = vmatprep.subr.mxu0 0.0
    %213 = vmatpush2.msra.mxu0 0.0
    %214 = vmatprep.subr.mxu0 0.0
    %215 = vmatpush2.msra.mxu0 0.0
    %216 = vmatprep.subr.mxu0 0.0
    %217 = vmatpush2.msra.mxu0 0.0
    %218 = vmatprep.subr.mxu0 0.0
    %219 = vmatpush2.msra.mxu0 0.0
    %220 = vmatprep.subr.mxu0 0.0
    %221 = vmatpush2.msra.mxu0 0.0
    %222 = vmatprep.subr.mxu0 0.0
    %223 = vmatpush2.msra.mxu0 0.0
    %224 = vmatprep.subr.mxu0 0.0
    %225 = vmatpush2.msra.mxu0 0.0
    %226 = vmatprep.subr.mxu0 0.0
    %227 = vmatpush2.msra.mxu0 0.0
    %228 = vmatprep.subr.mxu0 0.0
    %229 = vmatpush2.msra.mxu0 0.0
    %230 = vmatprep.subr.mxu0 0.0
    %231 = vmatpush2.msra.mxu0 0.0
    %232 = vmatprep.subr.mxu0 0.0
    %233 = vmatpush2.msra.mxu0 0.0
    %234 = vmatprep.subr.mxu0 0.0
    %235 = vmatpush2.msra.mxu0 0.0
    %236 = vmatprep.subr.mxu0 0.0
    %237 = vmatpush2.msra.mxu0 0.0
    %238 = vmatprep.subr.mxu0 0.0
    %239 = vmatpush2.msra.mxu0 0.0
    %240 = vmatprep.mubr.f32.mxu0 0.0
    %241 = vmatmul.mubr.f32.gmra.mxu0 %v103
    %v242 = vpop.f32.mrf.mxu0
    %v243 = vadd.f32 %v92, %v242
    %v244 = vpop.f32.mrf.mxu0
    %v245 = vadd.f32 %v96, %v244
    %246 = vdwg.mxu0
    %vm247 = vcmp.gt.f32.partialorder %v172, 0.0
    %vm248 = vcmp.gt.f32.partialorder %v174, 0.0
    %vm249 = vcmp.gt.f32.partialorder %v243, 0.0
    %vm250 = vcmp.gt.f32.partialorder %v245, 0.0
    %v251 = vmul.f32 %v172, 0.2
    %v252 = vmul.f32 %v174, 0.2
    %v253 = vmul.f32 %v243, 0.2
    %v254 = vmul.f32 %v245, 0.2
    %v255 = vsel %vm247, %v172, %v251
    %v256 = vsel %vm248, %v174, %v252
    %v257 = vsel %vm249, %v243, %v253
    %v258 = vsel %vm250, %v245, %v254
    %v263 = vcombine.low %v255, %v256
    %v264 = vcombine.low %v257, %v258
    %v266 = vunpack.c.l.s4 1983009808
    %v267 = vunpack.c.0.s8 %v266
    %v268 = vlaneseq
    %v269 = vshrl.u32 %v268, 7
    %v270 = vsub.s32 %v267, %v269
    %v271 = vrot.slane %v263, %v270
    %v273 = vunpack.c.l.s4 1983009808
    %v274 = vunpack.c.0.s8 %v273
    %v275 = vlaneseq
    %v276 = vshrl.u32 %v275, 7
    %v277 = vsub.s32 %v274, %v276
    %v278 = vrot.slane %v264, %v277
    %v279 = vcombine.low %v271, %v278
    %281 = vst [vmem:[#allocation8] sm:$0xff] %v279
    // Predicated region
    $region26: #{tpu_custom_call.1} parent=1 // pred_check
      _
    $region27: #{tpu_custom_call.1} parent=1 // pred_check_branch
      %283 = sbr.rel (0) target = $region29
    $region28: #{tpu_custom_call.1} parent=1 // pred_region
      %s285 = ssub.s32 128, 128
      %286 = vsyncadd [#allocation4], %s285
      %s288 = sshll.u32 [#allocation8], 4
      %s289 = int_to_ptr.vmem [resolvable:$true] %s288
      %291 = dma.vmem_to_hbm [thread:$0]  %s289, 128, %s3, [#allocation4]
    $region29: #{tpu_custom_call.1} parent=1 // pred_fallthru
      _
    // Predicated region
    $region30: #{tpu_custom_call.1} parent=1 // pred_check
      _
    $region31: #{tpu_custom_call.1} parent=1 // pred_check_branch
      %293 = sbr.rel (0) target = $region33
    $region32: #{tpu_custom_call.1} parent=1 // pred_region
      %294 = dma.done [#allocation4], 128
    $region33: #{tpu_custom_call.1} parent=1 // pred_fallthru
      _
    %295 = vsyncpa [#allocation3], 1
    %296 = vsyncpa [#allocation6], 1
    %297 = vsyncpa [#allocation4], 1

</llo_original>
